<compile_context>
chip_gen: v7x
topology: tpu7x:2x2x1
jax: 0.10.0
libtpu: 0.0.40
codegen_flags: <defaults>
</compile_context>

<pallas_src>
import jax
import jax.numpy as jnp
from jax import lax
from jax.experimental import pallas as pl
from jax.experimental.pallas import tpu as pltpu

D = 2            # number of discrete dims
S = 34           # vocabulary size
S_PAD = 64       # per-position padded vocab (stacked one-hot table: 2 * 64 = 128)
EMB = 128        # embedding width
T_DIM = 32       # time-embedding width
IN_DIM = EMB * D + T_DIM   # 288 (PyTorch layer-1 input width)
H_DIM = 128
OUT_DIM = S * D            # 68
OUT_PAD = 128              # lane-dense padded output width
TB_DEFAULT = 2048          # max batch rows per grid step


def _round_up(x, m):
    return ((x + m - 1) // m) * m


def _mlp_kernel(x_ref, t_ref, e_ref, w1t_ref, b1_ref, w2_ref, b2_ref,
                w3_ref, b3_ref, o_ref):
    """One batch tile of the in-kernel embedding gather + 3-layer MLP.

    x_ref : [TB, 2]   int32  discrete tokens, values in [0, S)
    t_ref : [TB, 32]  bf16   time embedding
    e_ref : [128,128] bf16   stacked folded embedding tables:
                             rows [0,34)  = emb @ W1[:128]
                             rows [64,98) = emb @ W1[128:256], other rows zero
    w1t   : [32, 128] bf16   W1 rows for the time features
    w2    : [128,128] bf16
    w3    : [128,128] bf16   zero-padded 68 -> 128 output lanes
    b*    : [1, out]  f32
    o_ref : [TB, 128] bf16   (columns 68..127 are zero)
    """
    tb = x_ref.shape[0]
    idx = x_ref[...]                                             # [TB, 2] int32
    col = lax.broadcasted_iota(jnp.int32, (tb, 2 * S_PAD), 1)    # [TB, 128]
    hit = (col == idx[:, 0:1]) | (col == idx[:, 1:2] + S_PAD)
    onehot = jnp.where(hit, 1.0, 0.0).astype(jnp.bfloat16)       # [TB, 128]

    # Layer 1: embedding gather as a one-hot MXU matmul + t @ W1_t (f32 acc).
    h = (jnp.dot(onehot, e_ref[...], preferred_element_type=jnp.float32)
         + jnp.dot(t_ref[...], w1t_ref[...], preferred_element_type=jnp.float32)
         + b1_ref[...])
    h = jnp.maximum(h, 0.0)
    # Layer 2.
    h = jnp.dot(h.astype(jnp.bfloat16), w2_ref[...],
                preferred_element_type=jnp.float32) + b2_ref[...]
    h = jnp.maximum(h, 0.0)
    # Layer 3 (output padded to 128 lanes -> unmasked 128-lane stores).
    y = jnp.dot(h.astype(jnp.bfloat16), w3_ref[...],
                preferred_element_type=jnp.float32) + b3_ref[...]
    o_ref[...] = y.astype(o_ref.dtype)


def mlp_pallas(x, t_bf16, e, w1t, b1, w2, b2, w3p, b3p, *, tb):
    """x: [B_pad, 2] int32, t_bf16: [B_pad, 32] bf16; B_pad is a multiple of tb."""
    b_pad = x.shape[0]
    grid = (b_pad // tb,)

    flops = 2 * b_pad * (2 * S_PAD * H_DIM + T_DIM * H_DIM
                         + H_DIM * H_DIM + H_DIM * OUT_PAD)
    bytes_accessed = (
        b_pad * (D * 4 + T_DIM * 2 + OUT_PAD * 2)                          # streams
        + (2 * S_PAD * H_DIM + T_DIM * H_DIM + H_DIM * H_DIM
           + H_DIM * OUT_PAD) * 2                                          # bf16 weights
        + (2 * H_DIM + OUT_PAD) * 4)                                       # f32 biases

    return pl.pallas_call(
        _mlp_kernel,
        out_shape=jax.ShapeDtypeStruct((b_pad, OUT_PAD), jnp.bfloat16),
        grid=grid,
        in_specs=[
            pl.BlockSpec((tb, D), lambda i: (i, 0)),                # x   (streamed)
            pl.BlockSpec((tb, T_DIM), lambda i: (i, 0)),            # t   (streamed)
            pl.BlockSpec((2 * S_PAD, H_DIM), lambda i: (0, 0)),     # e   (resident)
            pl.BlockSpec((T_DIM, H_DIM), lambda i: (0, 0)),         # w1t
            pl.BlockSpec((1, H_DIM), lambda i: (0, 0)),             # b1
            pl.BlockSpec((H_DIM, H_DIM), lambda i: (0, 0)),         # w2
            pl.BlockSpec((1, H_DIM), lambda i: (0, 0)),             # b2
            pl.BlockSpec((H_DIM, OUT_PAD), lambda i: (0, 0)),       # w3 (padded)
            pl.BlockSpec((1, OUT_PAD), lambda i: (0, 0)),           # b3 (padded)
        ],
        out_specs=pl.BlockSpec((tb, OUT_PAD), lambda i: (i, 0)),
        compiler_params=pltpu.CompilerParams(
            dimension_semantics=("parallel",)),
        cost_estimate=pl.CostEstimate(
            flops=flops, transcendentals=0, bytes_accessed=bytes_accessed),
    )(x, t_bf16, e, w1t, b1, w2, b2, w3p, b3p)


def init_params(key):
    """Deterministic synthetic parameters (shapes match the PyTorch module)."""
    ks = jax.random.split(key, 8)
    emb = jax.random.normal(ks[0], (S, EMB), jnp.float32) * 0.02
    # Linear weights stored as [in, out] (i.e. PyTorch weight.T).
    w1 = jax.random.normal(ks[1], (IN_DIM, H_DIM), jnp.float32) * (1.0 / jnp.sqrt(IN_DIM))
    b1 = jax.random.normal(ks[2], (1, H_DIM), jnp.float32) * 0.01
    w2 = jax.random.normal(ks[3], (H_DIM, H_DIM), jnp.float32) * (1.0 / jnp.sqrt(H_DIM))
    b2 = jax.random.normal(ks[4], (1, H_DIM), jnp.float32) * 0.01
    w3 = jax.random.normal(ks[5], (H_DIM, OUT_DIM), jnp.float32) * (1.0 / jnp.sqrt(H_DIM))
    b3 = jax.random.normal(ks[6], (1, OUT_DIM), jnp.float32) * 0.01
    return dict(emb=emb, w1=w1, b1=b1, w2=w2, b2=b2, w3=w3, b3=b3)


def fold_params(params):
    """Fold the embedding table into layer-1 and prepare kernel-ready weights.

    E_d = emb @ W1[d*128:(d+1)*128] ([S,128] each); layer 1 becomes
    E_0[x0] + E_1[x1] + t @ W1_t + b1 -- mathematically identical to the PyTorch
    gather+concat+Linear.  The two tables are stacked (vocab padded 34 -> 64 each)
    into one [128,128] bf16 slab so the in-kernel gather is a single one-hot matmul.
    Run this ONCE per parameter update, not per forward call.
    """
    hi = jax.lax.Precision.HIGHEST
    w1 = params["w1"]
    e0 = jnp.dot(params["emb"], w1[:EMB], precision=hi)            # [S, 128] f32
    e1 = jnp.dot(params["emb"], w1[EMB:2 * EMB], precision=hi)     # [S, 128] f32
    e = jnp.zeros((2 * S_PAD, H_DIM), jnp.float32)
    e = e.at[:S].set(e0).at[S_PAD:S_PAD + S].set(e1).astype(jnp.bfloat16)
    w1t = w1[2 * EMB:].astype(jnp.bfloat16)                        # [32, 128]
    w2 = params["w2"].astype(jnp.bfloat16)
    w3p = jnp.zeros((H_DIM, OUT_PAD), jnp.float32).at[:, :OUT_DIM].set(
        params["w3"]).astype(jnp.bfloat16)
    b3p = jnp.zeros((1, OUT_PAD), jnp.float32).at[:, :OUT_DIM].set(params["b3"])
    return dict(e=e, w1t=w1t, b1=params["b1"], w2=w2, b2=params["b2"],
                w3p=w3p, b3p=b3p)


def choose_tiling(batch):
    """Pick batch tile (multiple of 16 for bf16 sublane packing) and padded batch."""
    b16 = _round_up(max(batch, 1), 16)
    if b16 <= 16:
        tb = 16
    elif b16 <= 2 * TB_DEFAULT:
        tb = _round_up((b16 + 1) // 2, 16)   # >= 2 grid steps -> both TCs on v7x
    else:
        tb = TB_DEFAULT
    b_pad = _round_up(b16, tb)
    return tb, b_pad


def forward(fp, t, x):
    """fp: fold_params() output; t: f32 [B,32]; x: int [B,2] in [0,S). -> f32 [B,D,S]."""
    B = x.shape[0]
    tb, b_pad = choose_tiling(B)
    x_i = x.astype(jnp.int32)
    t_bf = t.astype(jnp.bfloat16)
    if b_pad != B:
        # Only the tiny index / time streams are padded (8 + 64 bytes per row).
        x_i = jnp.pad(x_i, ((0, b_pad - B), (0, 0)))
        t_bf = jnp.pad(t_bf, ((0, b_pad - B), (0, 0)))
    y = mlp_pallas(x_i, t_bf, fp["e"], fp["w1t"], fp["b1"], fp["w2"], fp["b2"],
                   fp["w3p"], fp["b3p"], tb=tb)                    # [B_pad, 128] bf16
    # TODO(synk): downstream consumers could take the padded bf16 [B_pad,128] layout
    # directly and skip this slice/reshape/cast copy.
    return y[:B, :OUT_DIM].reshape(B, D, S).astype(jnp.float32)


if __name__ == "__main__":
    key = jax.random.PRNGKey(0)
    pkey, tkey, xkey = jax.random.split(key, 3)

    params = init_params(pkey)
    fp = fold_params(params)        # hoisted: once per parameter update

    B = 2
    t = jax.random.normal(tkey, (B, T_DIM), jnp.float32)
    x = jax.random.randint(xkey, (B, D), 0, S, dtype=jnp.int32)

    y = forward(fp, t, x)
    y = jax.block_until_ready(y)

    # Pure-JAX f32 reference (exact PyTorch semantics: gather, concat, 3 linears).
    hi = jax.lax.Precision.HIGHEST
    x_emb = jnp.take(params["emb"], x, axis=0).reshape(B, D * EMB)
    x_and_t = jnp.concatenate([x_emb, t], axis=-1)
    h = jnp.maximum(jnp.dot(x_and_t, params["w1"], precision=hi) + params["b1"], 0.0)
    h = jnp.maximum(jnp.dot(h, params["w2"], precision=hi) + params["b2"], 0.0)
    y_ref = (jnp.dot(h, params["w3"], precision=hi) + params["b3"]).reshape(B, D, S)

    assert y.shape == (B, D, S)
    # Kernel uses bf16 operands / bf16 output stream with f32 accumulation.
    assert jnp.allclose(y, y_ref, atol=3e-2, rtol=3e-2)
    print("KERNEL_OK")
</pallas_src>

<mosaic_0001>
module attributes {stable_mosaic.version = 11 : i64} {
  func.func @_mlp_kernel(%arg0: i32, %arg1: memref<16x2xi32, #tpu.memory_space<vmem>>, %arg2: memref<16x32xbf16, #tpu.memory_space<vmem>>, %arg3: memref<128x128xbf16, #tpu.memory_space<vmem>>, %arg4: memref<32x128xbf16, #tpu.memory_space<vmem>>, %arg5: memref<1x128xf32, #tpu.memory_space<vmem>>, %arg6: memref<128x128xbf16, #tpu.memory_space<vmem>>, %arg7: memref<1x128xf32, #tpu.memory_space<vmem>>, %arg8: memref<128x128xbf16, #tpu.memory_space<vmem>>, %arg9: memref<1x128xf32, #tpu.memory_space<vmem>>, %arg10: memref<16x128xbf16, #tpu.memory_space<vmem>>) attributes {dimension_semantics = [#tpu.dimension_semantics<parallel>], iteration_bounds = array<i64: 1>, scalar_prefetch = 0 : i64, scratch_operands = 0 : i64, tpu.core_type = #tpu.core_type<tc>, window_params = [{transform_indices = @transform_0, window_bounds = array<i64: 16, 2>}, {transform_indices = @transform_1, window_bounds = array<i64: 16, 32>}, {pipeline_mode = #tpu.pipeline_mode<synchronous>, transform_indices = @transform_2, window_bounds = array<i64: 128, 128>}, {pipeline_mode = #tpu.pipeline_mode<synchronous>, transform_indices = @transform_3, window_bounds = array<i64: 32, 128>}, {pipeline_mode = #tpu.pipeline_mode<synchronous>, transform_indices = @transform_4, window_bounds = array<i64: 1, 128>}, {pipeline_mode = #tpu.pipeline_mode<synchronous>, transform_indices = @transform_5, window_bounds = array<i64: 128, 128>}, {pipeline_mode = #tpu.pipeline_mode<synchronous>, transform_indices = @transform_6, window_bounds = array<i64: 1, 128>}, {pipeline_mode = #tpu.pipeline_mode<synchronous>, transform_indices = @transform_7, window_bounds = array<i64: 128, 128>}, {pipeline_mode = #tpu.pipeline_mode<synchronous>, transform_indices = @transform_8, window_bounds = array<i64: 1, 128>}, {transform_indices = @transform_9, window_bounds = array<i64: 16, 128>}]} {
    %c0 = arith.constant 0 : index
    %c0_0 = arith.constant 0 : index
    %0 = vector.load %arg1[%c0, %c0_0] : memref<16x2xi32, #tpu.memory_space<vmem>>, vector<16x2xi32>
    %1 = tpu.iota {dimensions = array<i32: 1>} : vector<16x128xi32>
    %2 = vector.extract_strided_slice %0 {offsets = [0, 0], sizes = [16, 1], strides = [1, 1]} : vector<16x2xi32> to vector<16x1xi32>
    %3 = vector.broadcast %2 : vector<16x1xi32> to vector<16x128xi32>
    %4 = arith.cmpi eq, %1, %3 : vector<16x128xi32>
    %5 = vector.extract_strided_slice %0 {offsets = [0, 1], sizes = [16, 1], strides = [1, 1]} : vector<16x2xi32> to vector<16x1xi32>
    %c64_i32 = arith.constant 64 : i32
    %6 = vector.broadcast %c64_i32 : i32 to vector<16x1xi32>
    %7 = arith.addi %5, %6 : vector<16x1xi32>
    %8 = vector.broadcast %7 : vector<16x1xi32> to vector<16x128xi32>
    %9 = arith.cmpi eq, %1, %8 : vector<16x128xi32>
    %10 = arith.ori %4, %9 : vector<16x128xi1>
    %cst = arith.constant 1.000000e+00 : f32
    %cst_1 = arith.constant 0.000000e+00 : f32
    %11 = vector.broadcast %cst : f32 to vector<16x128xf32>
    %12 = vector.broadcast %cst_1 : f32 to vector<16x128xf32>
    %13 = arith.select %10, %11, %12 : vector<16x128xi1>, vector<16x128xf32>
    %14 = arith.truncf %13 : vector<16x128xf32> to vector<16x128xbf16>
    %c0_2 = arith.constant 0 : index
    %c0_3 = arith.constant 0 : index
    %15 = vector.load %arg3[%c0_2, %c0_3] : memref<128x128xbf16, #tpu.memory_space<vmem>>, vector<128x128xbf16>
    %cst_4 = arith.constant dense<0.000000e+00> : vector<16x128xf32>
    %16 = tpu.matmul %14, %15, %cst_4 {dimension_numbers = #tpu.dot_dimension_numbers<[1], [0], [0], [1], [0, 0, 1, 1], [], []>} : vector<16x128xbf16>, vector<128x128xbf16>, vector<16x128xf32> -> vector<16x128xf32>
    %c0_5 = arith.constant 0 : index
    %c0_6 = arith.constant 0 : index
    %17 = vector.load %arg2[%c0_5, %c0_6] : memref<16x32xbf16, #tpu.memory_space<vmem>>, vector<16x32xbf16>
    %c0_7 = arith.constant 0 : index
    %c0_8 = arith.constant 0 : index
    %18 = vector.load %arg4[%c0_7, %c0_8] : memref<32x128xbf16, #tpu.memory_space<vmem>>, vector<32x128xbf16>
    %cst_9 = arith.constant dense<0.000000e+00> : vector<16x128xf32>
    %19 = tpu.matmul %17, %18, %cst_9 {dimension_numbers = #tpu.dot_dimension_numbers<[1], [0], [0], [1], [0, 0, 1, 1], [], []>} : vector<16x32xbf16>, vector<32x128xbf16>, vector<16x128xf32> -> vector<16x128xf32>
    %20 = arith.addf %16, %19 : vector<16x128xf32>
    %c0_10 = arith.constant 0 : index
    %c0_11 = arith.constant 0 : index
    %21 = vector.load %arg5[%c0_10, %c0_11] : memref<1x128xf32, #tpu.memory_space<vmem>>, vector<1x128xf32>
    %22 = vector.broadcast %21 : vector<1x128xf32> to vector<16x128xf32>
    %23 = arith.addf %20, %22 : vector<16x128xf32>
    %cst_12 = arith.constant 0.000000e+00 : f32
    %24 = vector.broadcast %cst_12 : f32 to vector<16x128xf32>
    %25 = arith.maximumf %23, %24 : vector<16x128xf32>
    %26 = arith.truncf %25 : vector<16x128xf32> to vector<16x128xbf16>
    %c0_13 = arith.constant 0 : index
    %c0_14 = arith.constant 0 : index
    %27 = vector.load %arg6[%c0_13, %c0_14] : memref<128x128xbf16, #tpu.memory_space<vmem>>, vector<128x128xbf16>
    %cst_15 = arith.constant dense<0.000000e+00> : vector<16x128xf32>
    %28 = tpu.matmul %26, %27, %cst_15 {dimension_numbers = #tpu.dot_dimension_numbers<[1], [0], [0], [1], [0, 0, 1, 1], [], []>} : vector<16x128xbf16>, vector<128x128xbf16>, vector<16x128xf32> -> vector<16x128xf32>
    %c0_16 = arith.constant 0 : index
    %c0_17 = arith.constant 0 : index
    %29 = vector.load %arg7[%c0_16, %c0_17] : memref<1x128xf32, #tpu.memory_space<vmem>>, vector<1x128xf32>
    %30 = vector.broadcast %29 : vector<1x128xf32> to vector<16x128xf32>
    %31 = arith.addf %28, %30 : vector<16x128xf32>
    %cst_18 = arith.constant 0.000000e+00 : f32
    %32 = vector.broadcast %cst_18 : f32 to vector<16x128xf32>
    %33 = arith.maximumf %31, %32 : vector<16x128xf32>
    %34 = arith.truncf %33 : vector<16x128xf32> to vector<16x128xbf16>
    %c0_19 = arith.constant 0 : index
    %c0_20 = arith.constant 0 : index
    %35 = vector.load %arg8[%c0_19, %c0_20] : memref<128x128xbf16, #tpu.memory_space<vmem>>, vector<128x128xbf16>
    %cst_21 = arith.constant dense<0.000000e+00> : vector<16x128xf32>
    %36 = tpu.matmul %34, %35, %cst_21 {dimension_numbers = #tpu.dot_dimension_numbers<[1], [0], [0], [1], [0, 0, 1, 1], [], []>} : vector<16x128xbf16>, vector<128x128xbf16>, vector<16x128xf32> -> vector<16x128xf32>
    %c0_22 = arith.constant 0 : index
    %c0_23 = arith.constant 0 : index
    %37 = vector.load %arg9[%c0_22, %c0_23] : memref<1x128xf32, #tpu.memory_space<vmem>>, vector<1x128xf32>
    %38 = vector.broadcast %37 : vector<1x128xf32> to vector<16x128xf32>
    %39 = arith.addf %36, %38 : vector<16x128xf32>
    %40 = arith.truncf %39 : vector<16x128xf32> to vector<16x128xbf16>
    %c0_24 = arith.constant 0 : index
    %c0_25 = arith.constant 0 : index
    %41 = vector.load %arg10[%c0_24, %c0_25] : memref<16x128xbf16, #tpu.memory_space<vmem>>, vector<16x128xbf16>
    tpu.vector_store %arg10[%c0_24, %c0_25], %40 {strides = array<i32>} : memref<16x128xbf16, #tpu.memory_space<vmem>>, vector<16x128xbf16>,
    return
  }
  func.func @transform_0(%arg0: i32) -> (i32, i32) {
    %c0_i32 = arith.constant 0 : i32
    %c0_i32_0 = arith.constant 0 : i32
    return %arg0, %c0_i32 : i32, i32
  }
  func.func @transform_1(%arg0: i32) -> (i32, i32) {
    %c0_i32 = arith.constant 0 : i32
    %c0_i32_0 = arith.constant 0 : i32
    return %arg0, %c0_i32 : i32, i32
  }
  func.func @transform_2(%arg0: i32) -> (i32, i32) {
    %c0_i32 = arith.constant 0 : i32
    %c0_i32_0 = arith.constant 0 : i32
    %c0_i32_1 = arith.constant 0 : i32
    return %c0_i32, %c0_i32_0 : i32, i32
  }
  func.func @transform_3(%arg0: i32) -> (i32, i32) {
    %c0_i32 = arith.constant 0 : i32
    %c0_i32_0 = arith.constant 0 : i32
    %c0_i32_1 = arith.constant 0 : i32
    return %c0_i32, %c0_i32_0 : i32, i32
  }
  func.func @transform_4(%arg0: i32) -> (i32, i32) {
    %c0_i32 = arith.constant 0 : i32
    %c0_i32_0 = arith.constant 0 : i32
    %c0_i32_1 = arith.constant 0 : i32
    return %c0_i32, %c0_i32_0 : i32, i32
  }
  func.func @transform_5(%arg0: i32) -> (i32, i32) {
    %c0_i32 = arith.constant 0 : i32
    %c0_i32_0 = arith.constant 0 : i32
    %c0_i32_1 = arith.constant 0 : i32
    return %c0_i32, %c0_i32_0 : i32, i32
  }
  func.func @transform_6(%arg0: i32) -> (i32, i32) {
    %c0_i32 = arith.constant 0 : i32
    %c0_i32_0 = arith.constant 0 : i32
    %c0_i32_1 = arith.constant 0 : i32
    return %c0_i32, %c0_i32_0 : i32, i32
  }
  func.func @transform_7(%arg0: i32) -> (i32, i32) {
    %c0_i32 = arith.constant 0 : i32
    %c0_i32_0 = arith.constant 0 : i32
    %c0_i32_1 = arith.constant 0 : i32
    return %c0_i32, %c0_i32_0 : i32, i32
  }
  func.func @transform_8(%arg0: i32) -> (i32, i32) {
    %c0_i32 = arith.constant 0 : i32
    %c0_i32_0 = arith.constant 0 : i32
    %c0_i32_1 = arith.constant 0 : i32
    return %c0_i32, %c0_i32_0 : i32, i32
  }
  func.func @transform_9(%arg0: i32) -> (i32, i32) {
    %c0_i32 = arith.constant 0 : i32
    %c0_i32_0 = arith.constant 0 : i32
    return %arg0, %c0_i32 : i32, i32
  }
}

</mosaic_0001>

<llo_original>
// kernel: tpu_custom_call.1
$region0: #{tpu_custom_call.1}
  #allocation0 [shape = 'u32[]', space=smem, size = 0x4, offset = 0x4, fixed_abs, tag = 'smem constant byte address 0x4 - core index']
  #allocation1 [shape = 'u32[144,128]{1,0:T(1,128)}', space=vmem, size = 0x12000, scoped, tag = 'internal scratch']
  %s0 = inlined_call_operand.vmem [shape: s32[16,2], index: 0, kind: input, shape index: {}]
  %s1 = inlined_call_operand.vmem [shape: bf16[16,32], index: 1, kind: input, shape index: {}]
  %s2 = inlined_call_operand.hbm [shape: bf16[128,128], index: 2, kind: input, shape index: {}]
  %s3 = inlined_call_operand.vmem [shape: bf16[32,128], index: 3, kind: input, shape index: {}]
  %s4 = inlined_call_operand.vmem [shape: f32[1,128], index: 4, kind: input, shape index: {}]
  %s5 = inlined_call_operand.hbm [shape: bf16[128,128], index: 5, kind: input, shape index: {}]
  %s6 = inlined_call_operand.vmem [shape: f32[1,128], index: 6, kind: input, shape index: {}]
  %s7 = inlined_call_operand.hbm [shape: bf16[128,128], index: 7, kind: input, shape index: {}]
  %s8 = inlined_call_operand.vmem [shape: f32[1,128], index: 8, kind: input, shape index: {}]
  %s9 = inlined_call_operand.hbm [shape: bf16[16,128], index: 9, kind: output, shape index: {}]
  %s10 = sld [smem:[#allocation0]]
  $region58: #{tpu_custom_call.1} parent=0
    _
  %s12 = ssub.s32 1, %s10
  %s13 = scalar_select 0, %s12, %s10
  $region1: #{tpu_custom_call.1} parent=0
    #allocation2 [shape = 'u8[32768]{0}', space=vmem, size = 0x8000, scoped, tag = 'input window, operand 2, single buffered']
    #allocation3 [shape = 's32[1]{0}', space=sflag, size = 0x4, scoped, tag = 'scoped memory for tpu_custom_call.1']
    #allocation4 [shape = 's32[1]{0}', space=sflag, size = 0x4, scoped, tag = 'scoped memory for tpu_custom_call.1']
    #allocation5 [shape = 'u8[32768]{0}', space=vmem, size = 0x8000, scoped, tag = 'input window, operand 5, single buffered']
    #allocation6 [shape = 's32[1]{0}', space=sflag, size = 0x4, scoped, tag = 'scoped memory for tpu_custom_call.1']
    #allocation7 [shape = 'u8[32768]{0}', space=vmem, size = 0x8000, scoped, tag = 'input window, operand 7, single buffered']
    #allocation8 [shape = 'u8[4096]{0}', space=vmem, size = 0x1000, scoped, tag = 'output window, operand 0, single buffered']
    %14 = vsyncpa [#allocation3], 0
    %15 = vsyncpa [#allocation6], 0
    %16 = vsyncpa [#allocation4], 0
    // Predicated region
    $region2: #{tpu_custom_call.1} parent=1 // pred_check
      _
    $region3: #{tpu_custom_call.1} parent=1 // pred_check_branch
      %18 = sbr.rel (0) target = $region5
    $region4: #{tpu_custom_call.1} parent=1 // pred_region
      _
    $region5: #{tpu_custom_call.1} parent=1 // pred_fallthru
      _
    // Predicated region
    $region6: #{tpu_custom_call.1} parent=1 // pred_check
      _
    $region7: #{tpu_custom_call.1} parent=1 // pred_check_branch
      %20 = sbr.rel (0) target = $region9
    $region8: #{tpu_custom_call.1} parent=1 // pred_region
      _
    $region9: #{tpu_custom_call.1} parent=1 // pred_fallthru
      _
    // Predicated region
    $region10: #{tpu_custom_call.1} parent=1 // pred_check
      _
    $region11: #{tpu_custom_call.1} parent=1 // pred_check_branch
      %22 = sbr.rel (0) target = $region13
    $region12: #{tpu_custom_call.1} parent=1 // pred_region
      %s24 = ssub.s32 1024, 1024
      %25 = vsyncadd [#allocation3], %s24
      %s26 = sshll.u32 [#allocation2], 4
      %s27 = int_to_ptr.vmem [resolvable:$true] %s26
      %32 = dma.hbm_to_vmem [thread:$0]  %s2, 1024, %s27, [#allocation3], 64, 64, 4
    $region13: #{tpu_custom_call.1} parent=1 // pred_fallthru
      _
    // Predicated region
    $region14: #{tpu_custom_call.1} parent=1 // pred_check
      _
    $region15: #{tpu_custom_call.1} parent=1 // pred_check_branch
      %34 = sbr.rel (0) target = $region17
    $region16: #{tpu_custom_call.1} parent=1 // pred_region
      _
    $region17: #{tpu_custom_call.1} parent=1 // pred_fallthru
      _
    // Predicated region
    $region18: #{tpu_custom_call.1} parent=1 // pred_check
      _
    $region19: #{tpu_custom_call.1} parent=1 // pred_check_branch
      %36 = sbr.rel (0) target = $region21
    $region20: #{tpu_custom_call.1} parent=1 // pred_region
      _
    $region21: #{tpu_custom_call.1} parent=1 // pred_fallthru
      _
    // Predicated region
    $region22: #{tpu_custom_call.1} parent=1 // pred_check
      _
    $region23: #{tpu_custom_call.1} parent=1 // pred_check_branch
      %38 = sbr.rel (0) target = $region25
    $region24: #{tpu_custom_call.1} parent=1 // pred_region
      %s40 = ssub.s32 1024, 1024
      %41 = vsyncadd [#allocation6], %s40
      %s42 = sshll.u32 [#allocation5], 4
      %s43 = int_to_ptr.vmem [resolvable:$true] %s42
      %48 = dma.hbm_to_vmem [thread:$0]  %s5, 1024, %s43, [#allocation6], 64, 64, 4
    $region25: #{tpu_custom_call.1} parent=1 // pred_fallthru
      _
    // Predicated region
    $region26: #{tpu_custom_call.1} parent=1 // pred_check
      _
    $region27: #{tpu_custom_call.1} parent=1 // pred_check_branch
      %50 = sbr.rel (0) target = $region29
    $region28: #{tpu_custom_call.1} parent=1 // pred_region
      _
    $region29: #{tpu_custom_call.1} parent=1 // pred_fallthru
      _
    // Predicated region
    $region30: #{tpu_custom_call.1} parent=1 // pred_check
      _
    $region31: #{tpu_custom_call.1} parent=1 // pred_check_branch
      %52 = sbr.rel (0) target = $region33
    $region32: #{tpu_custom_call.1} parent=1 // pred_region
      %s54 = ssub.s32 1024, 1024
      %55 = vsyncadd [#allocation6], %s54
      %s56 = sshll.u32 [#allocation7], 4
      %s57 = int_to_ptr.vmem [resolvable:$true] %s56
      %62 = dma.hbm_to_vmem [thread:$0]  %s7, 1024, %s57, [#allocation6], 64, 64, 4
    $region33: #{tpu_custom_call.1} parent=1 // pred_fallthru
      _
    // Predicated region
    $region34: #{tpu_custom_call.1} parent=1 // pred_check
      _
    $region35: #{tpu_custom_call.1} parent=1 // pred_check_branch
      %64 = sbr.rel (0) target = $region37
    $region36: #{tpu_custom_call.1} parent=1 // pred_region
      _
    $region37: #{tpu_custom_call.1} parent=1 // pred_fallthru
      _
    // Predicated region
    $region38: #{tpu_custom_call.1} parent=1 // pred_check
      _
    $region39: #{tpu_custom_call.1} parent=1 // pred_check_branch
      %66 = sbr.rel (0) target = $region41
    $region40: #{tpu_custom_call.1} parent=1 // pred_region
      %67 = dma.done [#allocation3], 1024
    $region41: #{tpu_custom_call.1} parent=1 // pred_fallthru
      _
    // Predicated region
    $region42: #{tpu_custom_call.1} parent=1 // pred_check
      _
    $region43: #{tpu_custom_call.1} parent=1 // pred_check_branch
      %69 = sbr.rel (0) target = $region45
    $region44: #{tpu_custom_call.1} parent=1 // pred_region
      %70 = dma.done [#allocation6], 1024
    $region45: #{tpu_custom_call.1} parent=1 // pred_fallthru
      _
    // Predicated region
    $region46: #{tpu_custom_call.1} parent=1 // pred_check
      _
    $region47: #{tpu_custom_call.1} parent=1 // pred_check_branch
      %72 = sbr.rel (0) target = $region49
    $region48: #{tpu_custom_call.1} parent=1 // pred_region
      %73 = dma.done [#allocation6], 1024
    $region49: #{tpu_custom_call.1} parent=1 // pred_fallthru
      _
    %v75 = vld [vmem:[%s0] sm:$0xff]
    %v76 = vld [vmem:[%s0 + $0x8] sm:$0xff]
    %v77 = vlaneseq
    %v78 = vand.u32 %v77, 127
    %79 = vset.pattern.permute.xlu0 0
    %80 = vperm.xlu0 %79, %v75
    %v81 = vpop.permute.xlu0 %80
    %82 = vset.pattern.permute.xlu0 0
    %83 = vperm.xlu0 %82, %v76
    %v84 = vpop.permute.xlu0 %83
    %vm85 = vcmp.eq.s32.totalorder %v78, %v81
    %vm86 = vcmp.eq.s32.totalorder %v78, %v84
    %v87 = vadd.s32 %v75, 64
    %v88 = vadd.s32 %v76, 64
    %89 = vset.pattern.permute.xlu0 1
    %90 = vperm.xlu0 %89, %v87
    %v91 = vpop.permute.xlu0 %90
    %92 = vset.pattern.permute.xlu0 1
    %93 = vperm.xlu0 %92, %v88
    %v94 = vpop.permute.xlu0 %93
    %vm95 = vcmp.eq.s32.totalorder %v78, %v91
    %vm96 = vcmp.eq.s32.totalorder %v78, %v94
    %vm97 = vmor %vm85, %vm95
    %vm98 = vmor %vm86, %vm96
    %v99 = vsel %vm97, 1.0, 0.0
    %v100 = vsel %vm98, 1.0, 0.0
    %v101 = vpack.c.bf16 %v100, %v99
    %v102 = vld [vmem:[#allocation2] sm:$0xf]
    %v103 = vld [vmem:[#allocation2 + $0x4] sm:$0xf]
    %v104 = vld [vmem:[#allocation2 + $0x8] sm:$0xf]
    %v105 = vld [vmem:[#allocation2 + $0xc] sm:$0xf]
    %v106 = vld [vmem:[#allocation2 + $0x10] sm:$0xf]
    %v107 = vld [vmem:[#allocation2 + $0x14] sm:$0xf]
    %v108 = vld [vmem:[#allocation2 + $0x18] sm:$0xf]
    %v109 = vld [vmem:[#allocation2 + $0x1c] sm:$0xf]
    %v110 = vld [vmem:[#allocation2 + $0x20] sm:$0xf]
    %v111 = vld [vmem:[#allocation2 + $0x24] sm:$0xf]
    %v112 = vld [vmem:[#allocation2 + $0x28] sm:$0xf]
    %v113 = vld [vmem:[#allocation2 + $0x2c] sm:$0xf]
    %v114 = vld [vmem:[#allocation2 + $0x30] sm:$0xf]
    %v115 = vld [vmem:[#allocation2 + $0x34] sm:$0xf]
    %v116 = vld [vmem:[#allocation2 + $0x38] sm:$0xf]
    %v117 = vld [vmem:[#allocation2 + $0x3c] sm:$0xf]
    %v118 = vld [vmem:[%s1] sm:$0xf]
    %v119 = vld [vmem:[%s1 + $0x4] sm:$0xf]
    %v120 = vld [vmem:[%s3] sm:$0xf]
    %v121 = vld [vmem:[%s3 + $0x4] sm:$0xf]
    %v122 = vld [vmem:[%s3 + $0x8] sm:$0xf]
    %v123 = vld [vmem:[%s3 + $0xc] sm:$0xf]
    %v126 = vunpack.c.l.b16 %v118
    %v127 = vunpack.c.l.b16 %v119
    %v128 = vpack.c.b16 %v127, %v126
    %v133 = vunpack.c.l.b16 %v120
    %v134 = vunpack.c.l.b16 %v121
    %v135 = vunpack.c.l.b16 %v122
    %v136 = vunpack.c.l.b16 %v123
    %v137 = vpack.c.b16 %v134, %v133
    %v138 = vpack.c.b16 %v136, %v135
    %vm141 = vcmask 261120
    %v143 = vsel %vm141, %v128, 0
    %145 = vmatprep.subr.bf16.mxu0 0
    %146 = vmatpush1.bf16.msra.mxu0 %v137
    %147 = vmatprep.subr.bf16.mxu0 0
    %148 = vmatpush1.bf16.msra.mxu0 %v138
    %149 = vmatprep.subr.bf16.mxu0 0
    %150 = vmatpush1.bf16.msra.mxu0 0
    %151 = vmatprep.subr.bf16.mxu0 0
    %152 = vmatpush1.bf16.msra.mxu0 0
    %153 = vmatprep.subr.bf16.mxu0 0
    %154 = vmatpush1.bf16.msra.mxu0 0
    %155 = vmatprep.subr.bf16.mxu0 0
    %156 = vmatpush1.bf16.msra.mxu0 0
    %157 = vmatprep.subr.bf16.mxu0 0
    %158 = vmatpush1.bf16.msra.mxu0 0
    %159 = vmatprep.subr.bf16.mxu0 0
    %160 = vmatpush1.bf16.msra.mxu0 0
    %161 = vmatprep.subr.bf16.mxu0 0
    %162 = vmatpush1.bf16.msra.mxu0 0
    %163 = vmatprep.subr.bf16.mxu0 0
    %164 = vmatpush1.bf16.msra.mxu0 0
    %165 = vmatprep.subr.bf16.mxu0 0
    %166 = vmatpush1.bf16.msra.mxu0 0
    %167 = vmatprep.subr.bf16.mxu0 0
    %168 = vmatpush1.bf16.msra.mxu0 0
    %169 = vmatprep.subr.bf16.mxu0 0
    %170 = vmatpush1.bf16.msra.mxu0 0
    %171 = vmatprep.subr.bf16.mxu0 0
    %172 = vmatpush1.bf16.msra.mxu0 0
    %173 = vmatprep.subr.bf16.mxu0 0
    %174 = vmatpush1.bf16.msra.mxu0 0
    %175 = vmatprep.subr.bf16.mxu0 0
    %176 = vmatpush1.bf16.msra.mxu0 0
    %177 = vmatprep.mubr.bf16.mxu0 0
    %178 = vmatmul.mubr.bf16.gmra.mrb[0].mxu0 %v143
    %v179 = vpop.f32.mrb[0].mxu0
    %v180 = vadd.f32 0.0, %v179
    %v181 = vpop.f32.mrb[0].mxu0
    %v182 = vpop.f32.mrb[0].mxu0
    %v183 = vadd.f32 0.0, %v182
    %v184 = vpop.f32.mrb[0].mxu0
    %185 = vdwg.mxu0
    %v202 = vunpack.c.l.b16 %v102
    %v203 = vunpack.c.l.b16 %v103
    %v204 = vunpack.c.l.b16 %v104
    %v205 = vunpack.c.l.b16 %v105
    %v206 = vunpack.c.l.b16 %v106
    %v207 = vunpack.c.l.b16 %v107
    %v208 = vunpack.c.l.b16 %v108
    %v209 = vunpack.c.l.b16 %v109
    %v210 = vunpack.c.l.b16 %v110
    %v211 = vunpack.c.l.b16 %v111
    %v212 = vunpack.c.l.b16 %v112
    %v213 = vunpack.c.l.b16 %v113
    %v214 = vunpack.c.l.b16 %v114
    %v215 = vunpack.c.l.b16 %v115
    %v216 = vunpack.c.l.b16 %v116
    %v217 = vunpack.c.l.b16 %v117
    %v218 = vpack.c.b16 %v203, %v202
    %v219 = vpack.c.b16 %v205, %v204
    %v220 = vpack.c.b16 %v207, %v206
    %v221 = vpack.c.b16 %v209, %v208
    %v222 = vpack.c.b16 %v211, %v210
    %v223 = vpack.c.b16 %v213, %v212
    %v224 = vpack.c.b16 %v215, %v214
    %v225 = vpack.c.b16 %v217, %v216
    %234 = vmatprep.subr.bf16.mxu0 0
    %235 = vmatpush1.bf16.msra.mxu0 %v218
    %236 = vmatprep.subr.bf16.mxu0 0
    %237 = vmatpush1.bf16.msra.mxu0 %v219
    %238 = vmatprep.subr.bf16.mxu0 0
    %239 = vmatpush1.bf16.msra.mxu0 %v220
    %240 = vmatprep.subr.bf16.mxu0 0
    %241 = vmatpush1.bf16.msra.mxu0 %v221
    %242 = vmatprep.subr.bf16.mxu0 0
    %243 = vmatpush1.bf16.msra.mxu0 %v222
    %244 = vmatprep.subr.bf16.mxu0 0
    %245 = vmatpush1.bf16.msra.mxu0 %v223
    %246 = vmatprep.subr.bf16.mxu0 0
    %247 = vmatpush1.bf16.msra.mxu0 %v224
    %248 = vmatprep.subr.bf16.mxu0 0
    %249 = vmatpush1.bf16.msra.mxu0 %v225
    %250 = vmatprep.subr.bf16.mxu0 0
    %251 = vmatpush1.bf16.msra.mxu0 0
    %252 = vmatprep.subr.bf16.mxu0 0
    %253 = vmatpush1.bf16.msra.mxu0 0
    %254 = vmatprep.subr.bf16.mxu0 0
    %255 = vmatpush1.bf16.msra.mxu0 0
    %256 = vmatprep.subr.bf16.mxu0 0
    %257 = vmatpush1.bf16.msra.mxu0 0
    %258 = vmatprep.subr.bf16.mxu0 0
    %259 = vmatpush1.bf16.msra.mxu0 0
    %260 = vmatprep.subr.bf16.mxu0 0
    %261 = vmatpush1.bf16.msra.mxu0 0
    %262 = vmatprep.subr.bf16.mxu0 0
    %263 = vmatpush1.bf16.msra.mxu0 0
    %264 = vmatprep.subr.bf16.mxu0 0
    %265 = vmatpush1.bf16.msra.mxu0 0
    %266 = vmatprep.mubr.bf16.mxu0 0
    %267 = vmatmul.mubr.bf16.gmra.mrb[0].mxu0 %v101
    %v268 = vpop.f32.mrb[0].mxu0
    %v269 = vadd.f32 %v180, %v268
    %v270 = vpop.f32.mrb[0].mxu0
    %v271 = vpop.f32.mrb[0].mxu0
    %v272 = vadd.f32 %v183, %v271
    %v273 = vpop.f32.mrb[0].mxu0
    %274 = vdwg.mxu0
    %v275 = vld [vmem:[%s4] sm:$0x1]
    %v277 = vlaneseq
    %v278 = vshrl.u32 %v277, 7
    %v279 = vsub.s32 0, %v278
    %v280 = vrot.slane %v275, %v279
    %v282 = vadd.f32 %v269, %v280
    %v283 = vadd.f32 %v272, %v280
    %v284 = vmax.f32 %v282, 0.0
    %v285 = vmax.f32 %v283, 0.0
    %v286 = vpack.c.bf16 %v285, %v284
    %v287 = vld [vmem:[#allocation5] sm:$0xf]
    %v288 = vld [vmem:[#allocation5 + $0x4] sm:$0xf]
    %v289 = vld [vmem:[#allocation5 + $0x8] sm:$0xf]
    %v290 = vld [vmem:[#allocation5 + $0xc] sm:$0xf]
    %v291 = vld [vmem:[#allocation5 + $0x10] sm:$0xf]
    %v292 = vld [vmem:[#allocation5 + $0x14] sm:$0xf]
    %v293 = vld [vmem:[#allocation5 + $0x18] sm:$0xf]
    %v294 = vld [vmem:[#allocation5 + $0x1c] sm:$0xf]
    %v295 = vld [vmem:[#allocation5 + $0x20] sm:$0xf]
    %v296 = vld [vmem:[#allocation5 + $0x24] sm:$0xf]
    %v297 = vld [vmem:[#allocation5 + $0x28] sm:$0xf]
    %v298 = vld [vmem:[#allocation5 + $0x2c] sm:$0xf]
    %v299 = vld [vmem:[#allocation5 + $0x30] sm:$0xf]
    %v300 = vld [vmem:[#allocation5 + $0x34] sm:$0xf]
    %v301 = vld [vmem:[#allocation5 + $0x38] sm:$0xf]
    %v302 = vld [vmem:[#allocation5 + $0x3c] sm:$0xf]
    %v303 = vld [vmem:[%s6] sm:$0x1]
    %v305 = vlaneseq
    %v306 = vshrl.u32 %v305, 7
    %v307 = vsub.s32 0, %v306
    %v308 = vrot.slane %v303, %v307
    %v326 = vunpack.c.l.b16 %v287
    %v327 = vunpack.c.l.b16 %v288
    %v328 = vunpack.c.l.b16 %v289
    %v329 = vunpack.c.l.b16 %v290
    %v330 = vunpack.c.l.b16 %v291
    %v331 = vunpack.c.l.b16 %v292
    %v332 = vunpack.c.l.b16 %v293
    %v333 = vunpack.c.l.b16 %v294
    %v334 = vunpack.c.l.b16 %v295
    %v335 = vunpack.c.l.b16 %v296
    %v336 = vunpack.c.l.b16 %v297
    %v337 = vunpack.c.l.b16 %v298
    %v338 = vunpack.c.l.b16 %v299
    %v339 = vunpack.c.l.b16 %v300
    %v340 = vunpack.c.l.b16 %v301
    %v341 = vunpack.c.l.b16 %v302
    %v342 = vpack.c.b16 %v327, %v326
    %v343 = vpack.c.b16 %v329, %v328
    %v344 = vpack.c.b16 %v331, %v330
    %v345 = vpack.c.b16 %v333, %v332
    %v346 = vpack.c.b16 %v335, %v334
    %v347 = vpack.c.b16 %v337, %v336
    %v348 = vpack.c.b16 %v339, %v338
    %v349 = vpack.c.b16 %v341, %v340
    %358 = vmatprep.subr.bf16.mxu0 0
    %359 = vmatpush1.bf16.msra.mxu0 %v342
    %360 = vmatprep.subr.bf16.mxu0 0
    %361 = vmatpush1.bf16.msra.mxu0 %v343
    %362 = vmatprep.subr.bf16.mxu0 0
    %363 = vmatpush1.bf16.msra.mxu0 %v344
    %364 = vmatprep.subr.bf16.mxu0 0
    %365 = vmatpush1.bf16.msra.mxu0 %v345
    %366 = vmatprep.subr.bf16.mxu0 0
    %367 = vmatpush1.bf16.msra.mxu0 %v346
    %368 = vmatprep.subr.bf16.mxu0 0
    %369 = vmatpush1.bf16.msra.mxu0 %v347
    %370 = vmatprep.subr.bf16.mxu0 0
    %371 = vmatpush1.bf16.msra.mxu0 %v348
    %372 = vmatprep.subr.bf16.mxu0 0
    %373 = vmatpush1.bf16.msra.mxu0 %v349
    %374 = vmatprep.subr.bf16.mxu0 0
    %375 = vmatpush1.bf16.msra.mxu0 0
    %376 = vmatprep.subr.bf16.mxu0 0
    %377 = vmatpush1.bf16.msra.mxu0 0
    %378 = vmatprep.subr.bf16.mxu0 0
    %379 = vmatpush1.bf16.msra.mxu0 0
    %380 = vmatprep.subr.bf16.mxu0 0
    %381 = vmatpush1.bf16.msra.mxu0 0
    %382 = vmatprep.subr.bf16.mxu0 0
    %383 = vmatpush1.bf16.msra.mxu0 0
    %384 = vmatprep.subr.bf16.mxu0 0
    %385 = vmatpush1.bf16.msra.mxu0 0
    %386 = vmatprep.subr.bf16.mxu0 0
    %387 = vmatpush1.bf16.msra.mxu0 0
    %388 = vmatprep.subr.bf16.mxu0 0
    %389 = vmatpush1.bf16.msra.mxu0 0
    %390 = vmatprep.mubr.bf16.mxu0 0
    %391 = vmatmul.mubr.bf16.gmra.mrb[0].mxu0 %v286
    %v392 = vpop.f32.mrb[0].mxu0
    %v393 = vadd.f32 %v308, %v392
    %v394 = vpop.f32.mrb[0].mxu0
    %v395 = vpop.f32.mrb[0].mxu0
    %v396 = vadd.f32 %v308, %v395
    %v397 = vpop.f32.mrb[0].mxu0
    %398 = vdwg.mxu0
    %v399 = vmax.f32 %v393, 0.0
    %v400 = vmax.f32 %v396, 0.0
    %v401 = vpack.c.bf16 %v400, %v399
    %v402 = vld [vmem:[#allocation7] sm:$0xf]
    %v403 = vld [vmem:[#allocation7 + $0x4] sm:$0xf]
    %v404 = vld [vmem:[#allocation7 + $0x8] sm:$0xf]
    %v405 = vld [vmem:[#allocation7 + $0xc] sm:$0xf]
    %v406 = vld [vmem:[#allocation7 + $0x10] sm:$0xf]
    %v407 = vld [vmem:[#allocation7 + $0x14] sm:$0xf]
    %v408 = vld [vmem:[#allocation7 + $0x18] sm:$0xf]
    %v409 = vld [vmem:[#allocation7 + $0x1c] sm:$0xf]
    %v410 = vld [vmem:[#allocation7 + $0x20] sm:$0xf]
    %v411 = vld [vmem:[#allocation7 + $0x24] sm:$0xf]
    %v412 = vld [vmem:[#allocation7 + $0x28] sm:$0xf]
    %v413 = vld [vmem:[#allocation7 + $0x2c] sm:$0xf]
    %v414 = vld [vmem:[#allocation7 + $0x30] sm:$0xf]
    %v415 = vld [vmem:[#allocation7 + $0x34] sm:$0xf]
    %v416 = vld [vmem:[#allocation7 + $0x38] sm:$0xf]
    %v417 = vld [vmem:[#allocation7 + $0x3c] sm:$0xf]
    %v418 = vld [vmem:[%s8] sm:$0x1]
    %v420 = vlaneseq
    %v421 = vshrl.u32 %v420, 7
    %v422 = vsub.s32 0, %v421
    %v423 = vrot.slane %v418, %v422
    %v441 = vunpack.c.l.b16 %v402
    %v442 = vunpack.c.l.b16 %v403
    %v443 = vunpack.c.l.b16 %v404
    %v444 = vunpack.c.l.b16 %v405
    %v445 = vunpack.c.l.b16 %v406
    %v446 = vunpack.c.l.b16 %v407
    %v447 = vunpack.c.l.b16 %v408
    %v448 = vunpack.c.l.b16 %v409
    %v449 = vunpack.c.l.b16 %v410
    %v450 = vunpack.c.l.b16 %v411
    %v451 = vunpack.c.l.b16 %v412
    %v452 = vunpack.c.l.b16 %v413
    %v453 = vunpack.c.l.b16 %v414
    %v454 = vunpack.c.l.b16 %v415
    %v455 = vunpack.c.l.b16 %v416
    %v456 = vunpack.c.l.b16 %v417
    %v457 = vpack.c.b16 %v442, %v441
    %v458 = vpack.c.b16 %v444, %v443
    %v459 = vpack.c.b16 %v446, %v445
    %v460 = vpack.c.b16 %v448, %v447
    %v461 = vpack.c.b16 %v450, %v449
    %v462 = vpack.c.b16 %v452, %v451
    %v463 = vpack.c.b16 %v454, %v453
    %v464 = vpack.c.b16 %v456, %v455
    %473 = vmatprep.subr.bf16.mxu0 0
    %474 = vmatpush1.bf16.msra.mxu0 %v457
    %475 = vmatprep.subr.bf16.mxu0 0
    %476 = vmatpush1.bf16.msra.mxu0 %v458
    %477 = vmatprep.subr.bf16.mxu0 0
    %478 = vmatpush1.bf16.msra.mxu0 %v459
    %479 = vmatprep.subr.bf16.mxu0 0
    %480 = vmatpush1.bf16.msra.mxu0 %v460
    %481 = vmatprep.subr.bf16.mxu0 0
    %482 = vmatpush1.bf16.msra.mxu0 %v461
    %483 = vmatprep.subr.bf16.mxu0 0
    %484 = vmatpush1.bf16.msra.mxu0 %v462
    %485 = vmatprep.subr.bf16.mxu0 0
    %486 = vmatpush1.bf16.msra.mxu0 %v463
    %487 = vmatprep.subr.bf16.mxu0 0
    %488 = vmatpush1.bf16.msra.mxu0 %v464
    %489 = vmatprep.subr.bf16.mxu0 0
    %490 = vmatpush1.bf16.msra.mxu0 0
    %491 = vmatprep.subr.bf16.mxu0 0
    %492 = vmatpush1.bf16.msra.mxu0 0
    %493 = vmatprep.subr.bf16.mxu0 0
    %494 = vmatpush1.bf16.msra.mxu0 0
    %495 = vmatprep.subr.bf16.mxu0 0
    %496 = vmatpush1.bf16.msra.mxu0 0
    %497 = vmatprep.subr.bf16.mxu0 0
    %498 = vmatpush1.bf16.msra.mxu0 0
    %499 = vmatprep.subr.bf16.mxu0 0
    %500 = vmatpush1.bf16.msra.mxu0 0
    %501 = vmatprep.subr.bf16.mxu0 0
    %502 = vmatpush1.bf16.msra.mxu0 0
    %503 = vmatprep.subr.bf16.mxu0 0
    %504 = vmatpush1.bf16.msra.mxu0 0
    %505 = vmatprep.mubr.bf16.mxu0 0
    %506 = vmatmul.mubr.bf16.gmra.mrb[0].mxu0 %v401
    %v507 = vpop.f32.mrb[0].mxu0
    %v508 = vadd.f32 %v423, %v507
    %v509 = vpop.f32.mrb[0].mxu0
    %v510 = vpop.f32.mrb[0].mxu0
    %v511 = vadd.f32 %v423, %v510
    %v512 = vpop.f32.mrb[0].mxu0
    %513 = vdwg.mxu0
    %v514 = vpack.c.bf16 %v511, %v508
    %v516 = vunpack.c.l.b16 %v514
    %v517 = vunpack.c.h.b16 %v514
    %v518 = vpack.c.b16 %v516, %v516
    %v519 = vpack.c.b16 %v517, %v517
    %522 = vst [vmem:[#allocation8] sm:$0xf] %v518
    %523 = vst [vmem:[#allocation8 + $0x4] sm:$0xf] %v519
    // Predicated region
    $region50: #{tpu_custom_call.1} parent=1 // pred_check
      _
    $region51: #{tpu_custom_call.1} parent=1 // pred_check_branch
      %525 = sbr.rel (0) target = $region53
    $region52: #{tpu_custom_call.1} parent=1 // pred_region
      %s527 = ssub.s32 128, 128
      %528 = vsyncadd [#allocation4], %s527
      %s529 = sshll.u32 [#allocation8], 4
      %s530 = int_to_ptr.vmem [resolvable:$true] %s529
      %535 = dma.vmem_to_hbm [thread:$0]  %s530, 128, %s9, [#allocation4], 64, 64, 4
    $region53: #{tpu_custom_call.1} parent=1 // pred_fallthru
      _
    // Predicated region
    $region54: #{tpu_custom_call.1} parent=1 // pred_check
      _
    $region55: #{tpu_custom_call.1} parent=1 // pred_check_branch
      %537 = sbr.rel (0) target = $region57
    $region56: #{tpu_custom_call.1} parent=1 // pred_region
      %538 = dma.done [#allocation4], 128
    $region57: #{tpu_custom_call.1} parent=1 // pred_fallthru
      _
    %539 = vsyncpa [#allocation3], 1
    %540 = vsyncpa [#allocation6], 1
    %541 = vsyncpa [#allocation4], 1

</llo_original>
